<compile_context>
chip_gen: v7x
topology: tpu7x:2x2x1
jax: 0.10.0
libtpu: 0.0.40
codegen_flags: <defaults>
</compile_context>

<pallas_src>
import jax
import jax.numpy as jnp
from jax.experimental import pallas as pl
from jax.experimental.pallas import tpu as pltpu

NEG_SLOPE = 0.2
EPS = 1e-5


def _conv_stats_kernel(p_ref, w_ref, b_ref, y_ref, s_ref, ss_ref):
    """One big MXU dot per tile + bias, plus per-tile partial BN statistics.

      p_ref:  (1, Kp, TM)  bf16   im2col patches (K = taps*Cin, zero-padded)
      w_ref:  (Cout, Kp)   bf16   folded conv weights
      b_ref:  (Cout, 1)    f32    conv bias (channel on sublanes)
      y_ref:  (1, Cout, TM) f32   conv output tile (channels-first, lane-dense)
      s_ref:  (1, 1, Cout, 1) f32 per-tile channel sum
      ss_ref: (1, 1, Cout, 1) f32 per-tile channel sum of squares
    """
    acc = jnp.dot(w_ref[...], p_ref[0], preferred_element_type=jnp.float32)
    acc = acc + b_ref[...]                       # (Cout,1) broadcasts over lanes
    y_ref[0] = acc
    s_ref[0, 0] = jnp.sum(acc, axis=1, keepdims=True)
    ss_ref[0, 0] = jnp.sum(acc * acc, axis=1, keepdims=True)


def _bn_act_kernel(y_ref, scale_ref, shift_ref, o_ref):
    """Fused BatchNorm affine (precomputed scale/shift) + LeakyReLU(0.2)."""
    v = y_ref[0] * scale_ref[...] + shift_ref[...]
    o_ref[0] = jnp.where(v >= 0, v, NEG_SLOPE * v)


def _pick_tm(dhw):
    for tm in (2048, 1024, 512, 256, 128):
        if dhw % tm == 0:
            return tm
    return dhw


@jax.jit
def conv_block_3d_forward(x_ncdhw, w_oidhw, bias, gamma, beta):
    """Forward pass matching conv_block_3D (fresh module => BN uses batch stats)."""
    N, Cin, D, H, W = x_ncdhw.shape
    Cout = w_oidhw.shape[0]
    DHW = D * H * W
    K = 27 * Cin
    Kp = ((K + 127) // 128) * 128          # pad K to the native MXU depth
    TM = _pick_tm(DHW)
    MT = DHW // TM

    # --- im2col at the boundary (channels-first; taps folded into K) ---------
    xb = x_ncdhw.astype(jnp.bfloat16)
    xp = jnp.pad(xb, ((0, 0), (0, 0), (1, 1), (1, 1), (1, 1)))
    taps = [xp[:, :, kd:kd + D, kh:kh + H, kw:kw + W]
            for kd in range(3) for kh in range(3) for kw in range(3)]
    patches = jnp.stack(taps, axis=2).reshape(N, K, DHW)   # k = cin*27 + tap
    if Kp != K:
        patches = jnp.pad(patches, ((0, 0), (0, Kp - K), (0, 0)))

    wk = w_oidhw.reshape(Cout, K).astype(jnp.bfloat16)     # same k ordering
    if Kp != K:
        wk = jnp.pad(wk, ((0, 0), (0, Kp - K)))
    b = bias.reshape(Cout, 1).astype(jnp.float32)

    # --- conv as a lane-dense matmul + partial BN stats ----------------------
    y, psum, psq = pl.pallas_call(
        _conv_stats_kernel,
        out_shape=(jax.ShapeDtypeStruct((N, Cout, DHW), jnp.float32),
                   jax.ShapeDtypeStruct((N, MT, Cout, 1), jnp.float32),
                   jax.ShapeDtypeStruct((N, MT, Cout, 1), jnp.float32)),
        grid=(N, MT),
        in_specs=[
            pl.BlockSpec((1, Kp, TM), lambda n, m: (n, 0, m)),
            pl.BlockSpec((Cout, Kp), lambda n, m: (0, 0)),
            pl.BlockSpec((Cout, 1), lambda n, m: (0, 0)),
        ],
        out_specs=(
            pl.BlockSpec((1, Cout, TM), lambda n, m: (n, 0, m)),
            pl.BlockSpec((1, 1, Cout, 1), lambda n, m: (n, m, 0, 0)),
            pl.BlockSpec((1, 1, Cout, 1), lambda n, m: (n, m, 0, 0)),
        ),
        compiler_params=pltpu.CompilerParams(
            dimension_semantics=("parallel", "parallel")),
    )(patches, wk, b)

    # --- BN statistics (training mode => biased batch variance) --------------
    count = float(N * DHW)
    mean = jnp.sum(psum, axis=(0, 1)) / count              # (Cout, 1)
    ex2 = jnp.sum(psq, axis=(0, 1)) / count
    var = jnp.maximum(ex2 - mean * mean, 0.0)              # guard E[y^2]-E[y]^2
    inv_std = jax.lax.rsqrt(var + EPS)
    scale = gamma.reshape(Cout, 1).astype(jnp.float32) * inv_std
    shift = beta.reshape(Cout, 1).astype(jnp.float32) - mean * scale
    # TODO(synk): BatchNorm running_mean/running_var buffer updates (stateful,
    # do not affect the forward output) are not modeled.

    # --- BN affine + LeakyReLU, emitting the channels-first layout directly --
    out = pl.pallas_call(
        _bn_act_kernel,
        out_shape=jax.ShapeDtypeStruct((N, Cout, DHW), jnp.float32),
        grid=(N, MT),
        in_specs=[
            pl.BlockSpec((1, Cout, TM), lambda n, m: (n, 0, m)),
            pl.BlockSpec((Cout, 1), lambda n, m: (0, 0)),
            pl.BlockSpec((Cout, 1), lambda n, m: (0, 0)),
        ],
        out_specs=pl.BlockSpec((1, Cout, TM), lambda n, m: (n, 0, m)),
        compiler_params=pltpu.CompilerParams(
            dimension_semantics=("parallel", "parallel")),
    )(y, scale, shift)

    # already NC(DHW); reshape is free (contiguous)
    return out.reshape(N, Cout, D, H, W)


def _reference(x, w, bias, gamma, beta):
    Cout = w.shape[0]
    y = jax.lax.conv_general_dilated(
        x, w, window_strides=(1, 1, 1),
        padding=((1, 1), (1, 1), (1, 1)),
        dimension_numbers=('NCDHW', 'OIDHW', 'NCDHW'))
    y = y + bias.reshape(1, Cout, 1, 1, 1)
    mean = y.mean(axis=(0, 2, 3, 4), keepdims=True)
    var = y.var(axis=(0, 2, 3, 4), keepdims=True)
    z = (y - mean) * (gamma.reshape(1, Cout, 1, 1, 1) / jnp.sqrt(var + EPS)) \
        + beta.reshape(1, Cout, 1, 1, 1)
    return jnp.where(z >= 0, z, NEG_SLOPE * z)


if __name__ == "__main__":
    N, Cin, Cout, D, H, W = 2, 4, 8, 8, 8, 8

    key = jax.random.PRNGKey(0)
    kx, kw = jax.random.split(key)
    x = jax.random.normal(kx, (N, Cin, D, H, W), jnp.float32)

    # Conv3d params: kaiming_normal_(a=0.2, fan_in), zero bias (as in _init_weights)
    fan_in = Cin * 3 * 3 * 3
    gain = (2.0 / (1.0 + NEG_SLOPE ** 2)) ** 0.5
    std = gain / (fan_in ** 0.5)
    w = jax.random.normal(kw, (Cout, Cin, 3, 3, 3), jnp.float32) * std
    bias = jnp.zeros((Cout,), jnp.float32)
    # BatchNorm3d default affine init
    gamma = jnp.ones((Cout,), jnp.float32)
    beta = jnp.zeros((Cout,), jnp.float32)

    out = jax.block_until_ready(conv_block_3d_forward(x, w, bias, gamma, beta))
    ref = jax.block_until_ready(_reference(x, w, bias, gamma, beta))

    assert out.shape == (N, Cout, D, H, W), out.shape
    max_err = float(jnp.max(jnp.abs(out - ref)))
    # bf16 MXU inputs (f32 accumulation) vs f32 reference -> 2e-2 tolerance.
    assert max_err < 2e-2, f"max abs error {max_err}"
    print("KERNEL_OK")
</pallas_src>

<mosaic_0001>
module attributes {stable_mosaic.version = 11 : i64} {
  func.func @_conv_stats_kernel(%arg0: i32, %arg1: i32, %arg2: memref<1x128x512xbf16, #tpu.memory_space<vmem>>, %arg3: memref<8x128xbf16, #tpu.memory_space<vmem>>, %arg4: memref<8x1xf32, #tpu.memory_space<vmem>>, %arg5: memref<1x8x512xf32, #tpu.memory_space<vmem>>, %arg6: memref<1x1x8x1xf32, #tpu.memory_space<vmem>>, %arg7: memref<1x1x8x1xf32, #tpu.memory_space<vmem>>) attributes {dimension_semantics = [#tpu.dimension_semantics<parallel>, #tpu.dimension_semantics<parallel>], iteration_bounds = array<i64: 2, 1>, scalar_prefetch = 0 : i64, scratch_operands = 0 : i64, tpu.core_type = #tpu.core_type<tc>, window_params = [{transform_indices = @transform_0, window_bounds = array<i64: 1, 128, 512>}, {pipeline_mode = #tpu.pipeline_mode<synchronous>, transform_indices = @transform_1, window_bounds = array<i64: 8, 128>}, {pipeline_mode = #tpu.pipeline_mode<synchronous>, transform_indices = @transform_2, window_bounds = array<i64: 8, 1>}, {transform_indices = @transform_3, window_bounds = array<i64: 1, 8, 512>}, {transform_indices = @transform_4, window_bounds = array<i64: 1, 1, 8, 1>}, {transform_indices = @transform_5, window_bounds = array<i64: 1, 1, 8, 1>}]} {
    %c0 = arith.constant 0 : index
    %c0_0 = arith.constant 0 : index
    %0 = vector.load %arg3[%c0, %c0_0] : memref<8x128xbf16, #tpu.memory_space<vmem>>, vector<8x128xbf16>
    %c0_1 = arith.constant 0 : index
    %c0_2 = arith.constant 0 : index
    %c0_3 = arith.constant 0 : index
    %1 = vector.load %arg2[%c0_1, %c0_2, %c0_3] : memref<1x128x512xbf16, #tpu.memory_space<vmem>>, vector<1x128x512xbf16>
    %2 = vector.shape_cast %1 : vector<1x128x512xbf16> to vector<128x512xbf16>
    %cst = arith.constant dense<0.000000e+00> : vector<8x512xf32>
    %3 = tpu.matmul %0, %2, %cst {dimension_numbers = #tpu.dot_dimension_numbers<[1], [0], [0], [1], [0, 0, 1, 1], [], []>} : vector<8x128xbf16>, vector<128x512xbf16>, vector<8x512xf32> -> vector<8x512xf32>
    %c0_4 = arith.constant 0 : index
    %c0_5 = arith.constant 0 : index
    %4 = vector.load %arg4[%c0_4, %c0_5] : memref<8x1xf32, #tpu.memory_space<vmem>>, vector<8x1xf32>
    %5 = vector.broadcast %4 : vector<8x1xf32> to vector<8x512xf32>
    %6 = arith.addf %3, %5 : vector<8x512xf32>
    %c0_6 = arith.constant 0 : index
    %c0_7 = arith.constant 0 : index
    %c0_8 = arith.constant 0 : index
    %7 = vector.load %arg5[%c0_6, %c0_7, %c0_8] : memref<1x8x512xf32, #tpu.memory_space<vmem>>, vector<1x8x512xf32>
    %8 = vector.shape_cast %7 : vector<1x8x512xf32> to vector<8x512xf32>
    %9 = vector.shape_cast %6 : vector<8x512xf32> to vector<1x8x512xf32>
    tpu.vector_store %arg5[%c0_6, %c0_7, %c0_8], %9 {strides = array<i32>} : memref<1x8x512xf32, #tpu.memory_space<vmem>>, vector<1x8x512xf32>,
    %cst_9 = arith.constant dense<0.000000e+00> : vector<8xf32>
    %10 = vector.multi_reduction <add>, %6, %cst_9 [1] : vector<8x512xf32> to vector<8xf32>
    %11 = vector.shape_cast %10 : vector<8xf32> to vector<8x1xf32>
    %c0_10 = arith.constant 0 : index
    %c0_11 = arith.constant 0 : index
    %c0_12 = arith.constant 0 : index
    %c0_13 = arith.constant 0 : index
    %12 = vector.load %arg6[%c0_10, %c0_11, %c0_12, %c0_13] : memref<1x1x8x1xf32, #tpu.memory_space<vmem>>, vector<1x1x8x1xf32>
    %13 = vector.shape_cast %12 : vector<1x1x8x1xf32> to vector<8x1xf32>
    %14 = vector.shape_cast %11 : vector<8x1xf32> to vector<1x1x8x1xf32>
    tpu.vector_store %arg6[%c0_10, %c0_11, %c0_12, %c0_13], %14 {strides = array<i32>} : memref<1x1x8x1xf32, #tpu.memory_space<vmem>>, vector<1x1x8x1xf32>,
    %15 = arith.mulf %6, %6 : vector<8x512xf32>
    %cst_14 = arith.constant dense<0.000000e+00> : vector<8xf32>
    %16 = vector.multi_reduction <add>, %15, %cst_14 [1] : vector<8x512xf32> to vector<8xf32>
    %17 = vector.shape_cast %16 : vector<8xf32> to vector<8x1xf32>
    %c0_15 = arith.constant 0 : index
    %c0_16 = arith.constant 0 : index
    %c0_17 = arith.constant 0 : index
    %c0_18 = arith.constant 0 : index
    %18 = vector.load %arg7[%c0_15, %c0_16, %c0_17, %c0_18] : memref<1x1x8x1xf32, #tpu.memory_space<vmem>>, vector<1x1x8x1xf32>
    %19 = vector.shape_cast %18 : vector<1x1x8x1xf32> to vector<8x1xf32>
    %20 = vector.shape_cast %17 : vector<8x1xf32> to vector<1x1x8x1xf32>
    tpu.vector_store %arg7[%c0_15, %c0_16, %c0_17, %c0_18], %20 {strides = array<i32>} : memref<1x1x8x1xf32, #tpu.memory_space<vmem>>, vector<1x1x8x1xf32>,
    return
  }
  func.func @transform_0(%arg0: i32, %arg1: i32) -> (i32, i32, i32) {
    %c0_i32 = arith.constant 0 : i32
    %c0_i32_0 = arith.constant 0 : i32
    return %arg0, %c0_i32, %arg1 : i32, i32, i32
  }
  func.func @transform_1(%arg0: i32, %arg1: i32) -> (i32, i32) {
    %c0_i32 = arith.constant 0 : i32
    %c0_i32_0 = arith.constant 0 : i32
    %c0_i32_1 = arith.constant 0 : i32
    return %c0_i32, %c0_i32_0 : i32, i32
  }
  func.func @transform_2(%arg0: i32, %arg1: i32) -> (i32, i32) {
    %c0_i32 = arith.constant 0 : i32
    %c0_i32_0 = arith.constant 0 : i32
    %c0_i32_1 = arith.constant 0 : i32
    return %c0_i32, %c0_i32_0 : i32, i32
  }
  func.func @transform_3(%arg0: i32, %arg1: i32) -> (i32, i32, i32) {
    %c0_i32 = arith.constant 0 : i32
    %c0_i32_0 = arith.constant 0 : i32
    return %arg0, %c0_i32, %arg1 : i32, i32, i32
  }
  func.func @transform_4(%arg0: i32, %arg1: i32) -> (i32, i32, i32, i32) {
    %c0_i32 = arith.constant 0 : i32
    %c0_i32_0 = arith.constant 0 : i32
    %c0_i32_1 = arith.constant 0 : i32
    return %arg0, %arg1, %c0_i32, %c0_i32_0 : i32, i32, i32, i32
  }
  func.func @transform_5(%arg0: i32, %arg1: i32) -> (i32, i32, i32, i32) {
    %c0_i32 = arith.constant 0 : i32
    %c0_i32_0 = arith.constant 0 : i32
    %c0_i32_1 = arith.constant 0 : i32
    return %arg0, %arg1, %c0_i32, %c0_i32_0 : i32, i32, i32, i32
  }
}

module attributes {stable_mosaic.version = 11 : i64} {
  func.func @_bn_act_kernel(%arg0: i32, %arg1: i32, %arg2: memref<1x8x512xf32, #tpu.memory_space<vmem>>, %arg3: memref<8x1xf32, #tpu.memory_space<vmem>>, %arg4: memref<8x1xf32, #tpu.memory_space<vmem>>, %arg5: memref<1x8x512xf32, #tpu.memory_space<vmem>>) attributes {dimension_semantics = [#tpu.dimension_semantics<parallel>, #tpu.dimension_semantics<parallel>], iteration_bounds = array<i64: 2, 1>, scalar_prefetch = 0 : i64, scratch_operands = 0 : i64, tpu.core_type = #tpu.core_type<tc>, window_params = [{transform_indices = @transform_0, window_bounds = array<i64: 1, 8, 512>}, {pipeline_mode = #tpu.pipeline_mode<synchronous>, transform_indices = @transform_1, window_bounds = array<i64: 8, 1>}, {pipeline_mode = #tpu.pipeline_mode<synchronous>, transform_indices = @transform_2, window_bounds = array<i64: 8, 1>}, {transform_indices = @transform_3, window_bounds = array<i64: 1, 8, 512>}]} {
    %c0 = arith.constant 0 : index
    %c0_0 = arith.constant 0 : index
    %c0_1 = arith.constant 0 : index
    %0 = vector.load %arg2[%c0, %c0_0, %c0_1] : memref<1x8x512xf32, #tpu.memory_space<vmem>>, vector<1x8x512xf32>
    %1 = vector.shape_cast %0 : vector<1x8x512xf32> to vector<8x512xf32>
    %c0_2 = arith.constant 0 : index
    %c0_3 = arith.constant 0 : index
    %2 = vector.load %arg3[%c0_2, %c0_3] : memref<8x1xf32, #tpu.memory_space<vmem>>, vector<8x1xf32>
    %3 = vector.broadcast %2 : vector<8x1xf32> to vector<8x512xf32>
    %4 = arith.mulf %1, %3 : vector<8x512xf32>
    %c0_4 = arith.constant 0 : index
    %c0_5 = arith.constant 0 : index
    %5 = vector.load %arg4[%c0_4, %c0_5] : memref<8x1xf32, #tpu.memory_space<vmem>>, vector<8x1xf32>
    %6 = vector.broadcast %5 : vector<8x1xf32> to vector<8x512xf32>
    %7 = arith.addf %4, %6 : vector<8x512xf32>
    %cst = arith.constant 0.000000e+00 : f32
    %8 = vector.broadcast %cst : f32 to vector<8x512xf32>
    %9 = arith.cmpf oge, %7, %8 : vector<8x512xf32>
    %cst_6 = arith.constant 2.000000e-01 : f32
    %10 = vector.broadcast %cst_6 : f32 to vector<8x512xf32>
    %11 = arith.mulf %10, %7 : vector<8x512xf32>
    %12 = arith.select %9, %7, %11 : vector<8x512xi1>, vector<8x512xf32>
    %c0_7 = arith.constant 0 : index
    %c0_8 = arith.constant 0 : index
    %c0_9 = arith.constant 0 : index
    %13 = vector.load %arg5[%c0_7, %c0_8, %c0_9] : memref<1x8x512xf32, #tpu.memory_space<vmem>>, vector<1x8x512xf32>
    %14 = vector.shape_cast %13 : vector<1x8x512xf32> to vector<8x512xf32>
    %15 = vector.shape_cast %12 : vector<8x512xf32> to vector<1x8x512xf32>
    tpu.vector_store %arg5[%c0_7, %c0_8, %c0_9], %15 {strides = array<i32>} : memref<1x8x512xf32, #tpu.memory_space<vmem>>, vector<1x8x512xf32>,
    return
  }
  func.func @transform_0(%arg0: i32, %arg1: i32) -> (i32, i32, i32) {
    %c0_i32 = arith.constant 0 : i32
    %c0_i32_0 = arith.constant 0 : i32
    return %arg0, %c0_i32, %arg1 : i32, i32, i32
  }
  func.func @transform_1(%arg0: i32, %arg1: i32) -> (i32, i32) {
    %c0_i32 = arith.constant 0 : i32
    %c0_i32_0 = arith.constant 0 : i32
    %c0_i32_1 = arith.constant 0 : i32
    return %c0_i32, %c0_i32_0 : i32, i32
  }
  func.func @transform_2(%arg0: i32, %arg1: i32) -> (i32, i32) {
    %c0_i32 = arith.constant 0 : i32
    %c0_i32_0 = arith.constant 0 : i32
    %c0_i32_1 = arith.constant 0 : i32
    return %c0_i32, %c0_i32_0 : i32, i32
  }
  func.func @transform_3(%arg0: i32, %arg1: i32) -> (i32, i32, i32) {
    %c0_i32 = arith.constant 0 : i32
    %c0_i32_0 = arith.constant 0 : i32
    return %arg0, %c0_i32, %arg1 : i32, i32, i32
  }
}

</mosaic_0001>

<llo_original>
// kernel: conv_block_3d_forward.3
$region0: #{conv_block_3d_forward.3}
  #allocation0 [shape = 'u32[]', space=smem, size = 0x4, offset = 0x4, fixed_abs, tag = 'smem constant byte address 0x4 - core index']
  #allocation1 [shape = 'u32[144,128]{1,0:T(1,128)}', space=vmem, size = 0x12000, scoped, tag = 'internal scratch']
  %s0 = inlined_call_operand.vmem [shape: f32[2,8,512], index: 0, kind: input, shape index: {}]
  %s1 = inlined_call_operand.vmem [shape: f32[8,1], index: 1, kind: input, shape index: {}]
  %s2 = inlined_call_operand.vmem [shape: f32[8,1], index: 2, kind: input, shape index: {}]
  %s3 = inlined_call_operand.vmem [shape: f32[2,8,512], index: 3, kind: output, shape index: {}]
  %s4 = sld [smem:[#allocation0]]
  $region45: #{conv_block_3d_forward.3} parent=0
    _
  %s6 = ssub.s32 1, %s4
  %s7 = scalar_select 0, %s6, %s4
  loop: start=0, step=1, limit=4
  $region2: #{conv_block_3d_forward.3} parent=0 // loop_pre_header
    _
  $region3: #{conv_block_3d_forward.3} parent=0 // loop_header
    %s9 = sphi 0, %s13
    %p10 = scmp.ge.s32.totalorder %s9, 4
    %s16 = sphi 0, %s28
    %s17 = sphi 0, %s24
    %s18 = sphi 0, %s16
    %s19 = sphi 0, %s17
    %s20 = sphi 0, %s18
    %s21 = sphi 0, %s19
    %s33 = sphi 0, %s35
    %s36 = sphi 0, %s33
    %s37 = sphi 0, %s36
    %s53 = sphi 0, %s37
    %s57 = sphi 0, %s57
    %s59 = sphi 0, %s57
    %s60 = sphi 0, %s59
    %s74 = sphi 0, %s60
    %s78 = sphi 0, %s78
    %s80 = sphi 0, %s78
    %s81 = sphi 0, %s80
    %s95 = sphi 0, %s81
    %s103 = sphi 0, %s105
    %s106 = sphi 0, %s103
    %s107 = sphi 0, %s106
    %s123 = sphi 0, %s107
  $region4: #{conv_block_3d_forward.3} parent=0 // loop_header_branch
    %12 = sbr.rel (%p10) target = $region8
  $region5: #{conv_block_3d_forward.3} parent=0 // loop_body
    %s14 = ssub.s32 %s9, 1
    %s15 = ssub.s32 %s9, 2
    %s22 = sadd.s32 1, %s17
    %p23 = scmp.ge.s32.totalorder %s22, 1
    %s24 = scalar_select %p23, 0, %s22
    %s25 = sadd.s32 1, %s16
    %s26 = scalar_select %p23, %s25, %s16
    %p27 = scmp.ge.s32.totalorder %s26, 2
    %s28 = scalar_select %p27, 0, %s26
    %s29 = ssub.s32 %s16, %s28
    %s30 = ssub.s32 %s17, %s24
    %s31 = sor.u32 %s29, %s30
    %p32 = scmp.eq.s32.totalorder %s31, 0
    %s34 = sadd.s32 %s33, 1
    %s35 = scalar_select %p32, %s33, %s34
    %p38 = pneg %p32
    %p39 = scmp.eq.s32.totalorder %s9, 1
    %p40 = por %p38, %p39
    %p41 = scmp.ne.s32.totalorder %s33, %s36
    %p42 = scmp.eq.s32.totalorder %s9, 0
    %p43 = por %p41, %p42
    %p44 = scmp.ne.s32.totalorder %s33, %s36
    %p45 = scmp.eq.s32.totalorder %s14, 1
    %p46 = por %p44, %p45
    %p47 = scmp.ne.s32.totalorder %s36, %s37
    %p48 = scmp.eq.s32.totalorder %s14, 0
    %p49 = por %p47, %p48
    %p50 = scmp.ne.s32.totalorder %s36, %s37
    %p51 = scmp.eq.s32.totalorder %s15, 1
    %p52 = por %p50, %p51
    %p54 = scmp.ne.s32.totalorder %s37, %s53
    %p55 = scmp.eq.s32.totalorder %s15, 0
    %p56 = por %p54, %p55
    %s58 = sadd.s32 %s57, 1
    %p61 = scmp.eq.s32.totalorder %s9, 1
    %p62 = scmp.ne.s32.totalorder %s57, %s59
    %p63 = scmp.eq.s32.totalorder %s9, 0
    %p64 = por %p62, %p63
    %p65 = scmp.ne.s32.totalorder %s57, %s59
    %p66 = scmp.eq.s32.totalorder %s14, 1
    %p67 = por %p65, %p66
    %p68 = scmp.ne.s32.totalorder %s59, %s60
    %p69 = scmp.eq.s32.totalorder %s14, 0
    %p70 = por %p68, %p69
    %p71 = scmp.ne.s32.totalorder %s59, %s60
    %p72 = scmp.eq.s32.totalorder %s15, 1
    %p73 = por %p71, %p72
    %p75 = scmp.ne.s32.totalorder %s60, %s74
    %p76 = scmp.eq.s32.totalorder %s15, 0
    %p77 = por %p75, %p76
    %s79 = sadd.s32 %s78, 1
    %p82 = scmp.eq.s32.totalorder %s9, 1
    %p83 = scmp.ne.s32.totalorder %s78, %s80
    %p84 = scmp.eq.s32.totalorder %s9, 0
    %p85 = por %p83, %p84
    %p86 = scmp.ne.s32.totalorder %s78, %s80
    %p87 = scmp.eq.s32.totalorder %s14, 1
    %p88 = por %p86, %p87
    %p89 = scmp.ne.s32.totalorder %s80, %s81
    %p90 = scmp.eq.s32.totalorder %s14, 0
    %p91 = por %p89, %p90
    %p92 = scmp.ne.s32.totalorder %s80, %s81
    %p93 = scmp.eq.s32.totalorder %s15, 1
    %p94 = por %p92, %p93
    %p96 = scmp.ne.s32.totalorder %s81, %s95
    %p97 = scmp.eq.s32.totalorder %s15, 0
    %p98 = por %p96, %p97
    %s99 = ssub.s32 %s16, %s28
    %s100 = ssub.s32 %s17, %s24
    %s101 = sor.u32 %s99, %s100
    %p102 = scmp.eq.s32.totalorder %s101, 0
    %s104 = sadd.s32 %s103, 1
    %s105 = scalar_select %p102, %s103, %s104
    %p108 = pneg %p102
    %p109 = scmp.eq.s32.totalorder %s9, 1
    %p110 = por %p108, %p109
    %p111 = scmp.ne.s32.totalorder %s103, %s106
    %p112 = scmp.eq.s32.totalorder %s9, 0
    %p113 = por %p111, %p112
    %p114 = scmp.ne.s32.totalorder %s103, %s106
    %p115 = scmp.eq.s32.totalorder %s14, 1
    %p116 = por %p114, %p115
    %p117 = scmp.ne.s32.totalorder %s106, %s107
    %p118 = scmp.eq.s32.totalorder %s14, 0
    %p119 = por %p117, %p118
    %p120 = scmp.ne.s32.totalorder %s106, %s107
    %p121 = scmp.eq.s32.totalorder %s15, 1
    %p122 = por %p120, %p121
    %p124 = scmp.ne.s32.totalorder %s107, %s123
    %p125 = scmp.eq.s32.totalorder %s15, 0
    %p126 = por %p124, %p125
    %p127 = scmp.le.s32.totalorder 1, %s9
    %p128 = scmp.lt.s32.totalorder %s9, 3
    %p129 = pnand %p127, %p128
    %p130 = pneg %p129
    // Predicated region
    $region9: #{conv_block_3d_forward.3} parent=5 // pred_check
      _
    $region10: #{conv_block_3d_forward.3} parent=5 // pred_check_branch
      %132 = sbr.rel (%p129) target = $region12
    $region11: #{conv_block_3d_forward.3} parent=5 // pred_region
      %s133 = ssub.s32 %s9, 1
      // Predicated region
      $region13: #{conv_block_3d_forward.3} parent=11 // pred_check
        %p134 = pneg %p70
      $region14: #{conv_block_3d_forward.3} parent=11 // pred_check_branch
        %136 = sbr.rel (%p134) target = $region16
      $region15: #{conv_block_3d_forward.3} parent=11 // pred_region
        _
      $region16: #{conv_block_3d_forward.3} parent=11 // pred_fallthru
        _
      // Predicated region
      $region17: #{conv_block_3d_forward.3} parent=11 // pred_check
        %p137 = pneg %p91
      $region18: #{conv_block_3d_forward.3} parent=11 // pred_check_branch
        %139 = sbr.rel (%p137) target = $region20
      $region19: #{conv_block_3d_forward.3} parent=11 // pred_region
        _
      $region20: #{conv_block_3d_forward.3} parent=11 // pred_fallthru
        _
    $region12: #{conv_block_3d_forward.3} parent=5 // pred_fallthru
      _
    %p140 = scmp.lt.s32.totalorder %s9, 2
    // Predicated region
    $region21: #{conv_block_3d_forward.3} parent=5 // pred_check
      %p141 = pneg %p140
    $region22: #{conv_block_3d_forward.3} parent=5 // pred_check_branch
      %143 = sbr.rel (%p141) target = $region24
    $region23: #{conv_block_3d_forward.3} parent=5 // pred_region
      // Predicated region
      $region25: #{conv_block_3d_forward.3} parent=23 // pred_check
        %p144 = pneg %p43
      $region26: #{conv_block_3d_forward.3} parent=23 // pred_check_branch
        %146 = sbr.rel (%p144) target = $region28
      $region27: #{conv_block_3d_forward.3} parent=23 // pred_region
        %s147 = smul.u32 4, %s17
        %p148 = scmp.lt.s32.totalorder %s16, 1
        %s149 = scalar_select %p148, %s16, 1
        %p150 = scmp.lt.s32.totalorder %s147, 3
        %s151 = scalar_select %p150, %s147, 3
        %s152 = smul.addr %s149, 4
        %s153 = sadd.s32 %s151, %s152
        %s154 = smul.addr %s153, 8
        %s155 = scalar_lea.vmem %s0, %s154
        %s156 = smul.u32 4, %s17
      $region28: #{conv_block_3d_forward.3} parent=23 // pred_fallthru
        _
    $region24: #{conv_block_3d_forward.3} parent=5 // pred_fallthru
      _
    %p157 = scmp.le.s32.totalorder 1, %s9
    %p158 = scmp.lt.s32.totalorder %s9, 3
    %p159 = pnand %p157, %p158
    %p160 = pneg %p159
    // Predicated region
    $region29: #{conv_block_3d_forward.3} parent=5 // pred_check
      _
    $region30: #{conv_block_3d_forward.3} parent=5 // pred_check_branch
      %162 = sbr.rel (%p159) target = $region32
    $region31: #{conv_block_3d_forward.3} parent=5 // pred_region
      %s163 = ssub.s32 %s9, 1
      %s164 = smul.u32 4, %s19
      %p165 = scmp.lt.s32.totalorder %s18, 1
      %s166 = scalar_select %p165, %s18, 1
      %p167 = scmp.lt.s32.totalorder %s164, 3
      %s168 = scalar_select %p167, %s164, 3
      %s169 = smul.addr %s166, 4
      %s170 = sadd.s32 %s168, %s169
      %s171 = smul.addr %s170, 8
      %s172 = scalar_lea.vmem %s0, %s171
      %p173 = pneg %p49
      %p174 = pneg %p46
      %p175 = pneg %p70
      %p176 = pneg %p67
      %p177 = pneg %p91
      %p178 = pneg %p88
      %p179 = pneg %p119
      %p180 = pneg %p116
      %s181 = smul.u32 4, %s19
      %p182 = scmp.lt.s32.totalorder %s18, 1
      %s183 = scalar_select %p182, %s18, 1
      %p184 = scmp.lt.s32.totalorder %s181, 3
      %s185 = scalar_select %p184, %s181, 3
      %s186 = smul.addr %s183, 4
      %s187 = sadd.s32 %s185, %s186
      %s188 = smul.addr %s187, 8
      %s189 = scalar_lea.vmem %s3, %s188
      %s190 = smul.u32 4, %s19
      %p191 = scmp.lt.s32.totalorder %s18, 1
      %s192 = scalar_select %p191, %s18, 1
      %p193 = scmp.lt.s32.totalorder %s190, 3
      %s194 = scalar_select %p193, %s190, 3
      %s195 = smul.addr %s192, 4
      %s196 = sadd.s32 %s194, %s195
      %s197 = smul.addr %s196, 8
      %s198 = scalar_lea.vmem %s0, %s197
      %s199 = smul.u32 4, %s19
      %s200 = smul.u32 4, %s19
      %p201 = scmp.lt.s32.totalorder %s18, 1
      %s202 = scalar_select %p201, %s18, 1
      %p203 = scmp.lt.s32.totalorder %s200, 3
      %s204 = scalar_select %p203, %s200, 3
      %s205 = smul.addr %s202, 4
      %s206 = sadd.s32 %s204, %s205
      %s207 = smul.addr %s206, 8
      %s208 = scalar_lea.vmem %s3, %s207
      %s209 = smul.u32 4, %s19
      %v210 = vld [vmem:[%s198] sm:$0xff]
      %v211 = vld [vmem:[%s198 + $0x8] sm:$0xff]
      %v212 = vld [vmem:[%s198 + $0x10] sm:$0xff]
      %v213 = vld [vmem:[%s198 + $0x18] sm:$0xff]
      %v214 = vld [vmem:[%s1] sm:$0xff]
      %216 = vset.pattern.permute.xlu0 0
      %217 = vperm.xlu0 %216, %v214
      %v218 = vpop.permute.xlu0 %217
      %v220 = vmul.f32 %v210, %v218
      %v221 = vmul.f32 %v211, %v218
      %v222 = vmul.f32 %v212, %v218
      %v223 = vmul.f32 %v213, %v218
      %v224 = vld [vmem:[%s2] sm:$0xff]
      %226 = vset.pattern.permute.xlu0 0
      %227 = vperm.xlu0 %226, %v224
      %v228 = vpop.permute.xlu0 %227
      %v230 = vadd.f32 %v220, %v228
      %v231 = vadd.f32 %v221, %v228
      %v232 = vadd.f32 %v222, %v228
      %v233 = vadd.f32 %v223, %v228
      %vm234 = vcmp.ge.f32.partialorder %v230, 0.0
      %vm235 = vcmp.ge.f32.partialorder %v231, 0.0
      %vm236 = vcmp.ge.f32.partialorder %v232, 0.0
      %vm237 = vcmp.ge.f32.partialorder %v233, 0.0
      %v238 = vmul.f32 %v230, 0.2
      %v239 = vmul.f32 %v231, 0.2
      %v240 = vmul.f32 %v232, 0.2
      %v241 = vmul.f32 %v233, 0.2
      %v242 = vsel %vm234, %v230, %v238
      %v243 = vsel %vm235, %v231, %v239
      %v244 = vsel %vm236, %v232, %v240
      %v245 = vsel %vm237, %v233, %v241
      %246 = vst [vmem:[%s208] sm:$0xff] %v242
      %247 = vst [vmem:[%s208 + $0x8] sm:$0xff] %v243
      %248 = vst [vmem:[%s208 + $0x10] sm:$0xff] %v244
      %249 = vst [vmem:[%s208 + $0x18] sm:$0xff] %v245
      %s250 = smul.u32 4, %s19
      %p251 = scmp.lt.s32.totalorder %s18, 1
      %s252 = scalar_select %p251, %s18, 1
      %p253 = scmp.lt.s32.totalorder %s250, 3
      %s254 = scalar_select %p253, %s250, 3
      %s255 = smul.addr %s252, 4
      %s256 = sadd.s32 %s254, %s255
      %s257 = smul.addr %s256, 8
      %s258 = scalar_lea.vmem %s3, %s257
      // Predicated region
      $region33: #{conv_block_3d_forward.3} parent=31 // pred_check
        %p259 = pneg %p116
      $region34: #{conv_block_3d_forward.3} parent=31 // pred_check_branch
        %261 = sbr.rel (%p259) target = $region36
      $region35: #{conv_block_3d_forward.3} parent=31 // pred_region
        %s262 = smul.u32 4, %s19
      $region36: #{conv_block_3d_forward.3} parent=31 // pred_fallthru
        _
    $region32: #{conv_block_3d_forward.3} parent=5 // pred_fallthru
      _
    %p263 = scmp.le.s32.totalorder 2, %s9
    // Predicated region
    $region37: #{conv_block_3d_forward.3} parent=5 // pred_check
      %p264 = pneg %p263
    $region38: #{conv_block_3d_forward.3} parent=5 // pred_check_branch
      %266 = sbr.rel (%p264) target = $region40
    $region39: #{conv_block_3d_forward.3} parent=5 // pred_region
      %s267 = ssub.s32 %s9, 2
      // Predicated region
      $region41: #{conv_block_3d_forward.3} parent=39 // pred_check
        %p268 = pneg %p122
      $region42: #{conv_block_3d_forward.3} parent=39 // pred_check_branch
        %270 = sbr.rel (%p268) target = $region44
      $region43: #{conv_block_3d_forward.3} parent=39 // pred_region
        %s271 = smul.u32 4, %s21
        %p272 = scmp.lt.s32.totalorder %s20, 1
        %s273 = scalar_select %p272, %s20, 1
        %p274 = scmp.lt.s32.totalorder %s271, 3
        %s275 = scalar_select %p274, %s271, 3
        %s276 = smul.addr %s273, 4
        %s277 = sadd.s32 %s275, %s276
        %s278 = smul.addr %s277, 8
        %s279 = scalar_lea.vmem %s3, %s278
      $region44: #{conv_block_3d_forward.3} parent=39 // pred_fallthru
        _
    $region40: #{conv_block_3d_forward.3} parent=5 // pred_fallthru
      _
  $region6: #{conv_block_3d_forward.3} parent=0 // loop_footer
    %s13 = sadd.s32 1, %s9
  $region7: #{conv_block_3d_forward.3} parent=0 // loop_footer_branch
    %8 = sbr.rel target = $region3
  $region8: #{conv_block_3d_forward.3} parent=0 // loop_exit
    _

// kernel: conv_block_3d_forward.2
$region0: #{conv_block_3d_forward.2}
  #allocation0 [shape = 'u32[]', space=smem, size = 0x4, offset = 0x4, fixed_abs, tag = 'smem constant byte address 0x4 - core index']
  #allocation1 [shape = 'u32[144,128]{1,0:T(1,128)}', space=vmem, size = 0x12000, scoped, tag = 'internal scratch']
  %s0 = inlined_call_operand.vmem [shape: bf16[2,128,512], index: 0, kind: input, shape index: {}]
  %s1 = inlined_call_operand.vmem [shape: bf16[8,128], index: 1, kind: input, shape index: {}]
  %s2 = inlined_call_operand.vmem [shape: f32[8,1], index: 2, kind: input, shape index: {}]
  %s3 = inlined_call_operand.vmem [shape: f32[2,8,512], index: 3, kind: output, shape index: {0}]
  %s4 = inlined_call_operand.vmem [shape: f32[2,1,8,1], index: 4, kind: output, shape index: {1}]
  %s5 = inlined_call_operand.vmem [shape: f32[2,1,8,1], index: 5, kind: output, shape index: {2}]
  %6 = xla_tuple %s3, %s4, %s5
  %s7 = sld [smem:[#allocation0]]
  $region61: #{conv_block_3d_forward.2} parent=0
    _
  %s9 = ssub.s32 1, %s7
  %s10 = scalar_select 0, %s9, %s7
  loop: start=0, step=1, limit=4
  $region2: #{conv_block_3d_forward.2} parent=0 // loop_pre_header
    _
  $region3: #{conv_block_3d_forward.2} parent=0 // loop_header
    %s12 = sphi 0, %s16
    %p13 = scmp.ge.s32.totalorder %s12, 4
    %s19 = sphi 0, %s31
    %s20 = sphi 0, %s27
    %s21 = sphi 0, %s19
    %s22 = sphi 0, %s20
    %s23 = sphi 0, %s21
    %s24 = sphi 0, %s22
    %s36 = sphi 0, %s38
    %s39 = sphi 0, %s36
    %s40 = sphi 0, %s39
    %s56 = sphi 0, %s40
    %s60 = sphi 0, %s60
    %s62 = sphi 0, %s60
    %s63 = sphi 0, %s62
    %s77 = sphi 0, %s63
    %s81 = sphi 0, %s81
    %s83 = sphi 0, %s81
    %s84 = sphi 0, %s83
    %s98 = sphi 0, %s84
    %s106 = sphi 0, %s108
    %s109 = sphi 0, %s106
    %s110 = sphi 0, %s109
    %s126 = sphi 0, %s110
    %s134 = sphi 0, %s136
    %s137 = sphi 0, %s134
    %s138 = sphi 0, %s137
    %s154 = sphi 0, %s138
    %s162 = sphi 0, %s164
    %s165 = sphi 0, %s162
    %s166 = sphi 0, %s165
    %s182 = sphi 0, %s166
  $region4: #{conv_block_3d_forward.2} parent=0 // loop_header_branch
    %15 = sbr.rel (%p13) target = $region8
  $region5: #{conv_block_3d_forward.2} parent=0 // loop_body
    %s17 = ssub.s32 %s12, 1
    %s18 = ssub.s32 %s12, 2
    %s25 = sadd.s32 1, %s20
    %p26 = scmp.ge.s32.totalorder %s25, 1
    %s27 = scalar_select %p26, 0, %s25
    %s28 = sadd.s32 1, %s19
    %s29 = scalar_select %p26, %s28, %s19
    %p30 = scmp.ge.s32.totalorder %s29, 2
    %s31 = scalar_select %p30, 0, %s29
    %s32 = ssub.s32 %s19, %s31
    %s33 = ssub.s32 %s20, %s27
    %s34 = sor.u32 %s32, %s33
    %p35 = scmp.eq.s32.totalorder %s34, 0
    %s37 = sadd.s32 %s36, 1
    %s38 = scalar_select %p35, %s36, %s37
    %p41 = pneg %p35
    %p42 = scmp.eq.s32.totalorder %s12, 1
    %p43 = por %p41, %p42
    %p44 = scmp.ne.s32.totalorder %s36, %s39
    %p45 = scmp.eq.s32.totalorder %s12, 0
    %p46 = por %p44, %p45
    %p47 = scmp.ne.s32.totalorder %s36, %s39
    %p48 = scmp.eq.s32.totalorder %s17, 1
    %p49 = por %p47, %p48
    %p50 = scmp.ne.s32.totalorder %s39, %s40
    %p51 = scmp.eq.s32.totalorder %s17, 0
    %p52 = por %p50, %p51
    %p53 = scmp.ne.s32.totalorder %s39, %s40
    %p54 = scmp.eq.s32.totalorder %s18, 1
    %p55 = por %p53, %p54
    %p57 = scmp.ne.s32.totalorder %s40, %s56
    %p58 = scmp.eq.s32.totalorder %s18, 0
    %p59 = por %p57, %p58
    %s61 = sadd.s32 %s60, 1
    %p64 = scmp.eq.s32.totalorder %s12, 1
    %p65 = scmp.ne.s32.totalorder %s60, %s62
    %p66 = scmp.eq.s32.totalorder %s12, 0
    %p67 = por %p65, %p66
    %p68 = scmp.ne.s32.totalorder %s60, %s62
    %p69 = scmp.eq.s32.totalorder %s17, 1
    %p70 = por %p68, %p69
    %p71 = scmp.ne.s32.totalorder %s62, %s63
    %p72 = scmp.eq.s32.totalorder %s17, 0
    %p73 = por %p71, %p72
    %p74 = scmp.ne.s32.totalorder %s62, %s63
    %p75 = scmp.eq.s32.totalorder %s18, 1
    %p76 = por %p74, %p75
    %p78 = scmp.ne.s32.totalorder %s63, %s77
    %p79 = scmp.eq.s32.totalorder %s18, 0
    %p80 = por %p78, %p79
    %s82 = sadd.s32 %s81, 1
    %p85 = scmp.eq.s32.totalorder %s12, 1
    %p86 = scmp.ne.s32.totalorder %s81, %s83
    %p87 = scmp.eq.s32.totalorder %s12, 0
    %p88 = por %p86, %p87
    %p89 = scmp.ne.s32.totalorder %s81, %s83
    %p90 = scmp.eq.s32.totalorder %s17, 1
    %p91 = por %p89, %p90
    %p92 = scmp.ne.s32.totalorder %s83, %s84
    %p93 = scmp.eq.s32.totalorder %s17, 0
    %p94 = por %p92, %p93
    %p95 = scmp.ne.s32.totalorder %s83, %s84
    %p96 = scmp.eq.s32.totalorder %s18, 1
    %p97 = por %p95, %p96
    %p99 = scmp.ne.s32.totalorder %s84, %s98
    %p100 = scmp.eq.s32.totalorder %s18, 0
    %p101 = por %p99, %p100
    %s102 = ssub.s32 %s19, %s31
    %s103 = ssub.s32 %s20, %s27
    %s104 = sor.u32 %s102, %s103
    %p105 = scmp.eq.s32.totalorder %s104, 0
    %s107 = sadd.s32 %s106, 1
    %s108 = scalar_select %p105, %s106, %s107
    %p111 = pneg %p105
    %p112 = scmp.eq.s32.totalorder %s12, 1
    %p113 = por %p111, %p112
    %p114 = scmp.ne.s32.totalorder %s106, %s109
    %p115 = scmp.eq.s32.totalorder %s12, 0
    %p116 = por %p114, %p115
    %p117 = scmp.ne.s32.totalorder %s106, %s109
    %p118 = scmp.eq.s32.totalorder %s17, 1
    %p119 = por %p117, %p118
    %p120 = scmp.ne.s32.totalorder %s109, %s110
    %p121 = scmp.eq.s32.totalorder %s17, 0
    %p122 = por %p120, %p121
    %p123 = scmp.ne.s32.totalorder %s109, %s110
    %p124 = scmp.eq.s32.totalorder %s18, 1
    %p125 = por %p123, %p124
    %p127 = scmp.ne.s32.totalorder %s110, %s126
    %p128 = scmp.eq.s32.totalorder %s18, 0
    %p129 = por %p127, %p128
    %s130 = ssub.s32 %s19, %s31
    %s131 = ssub.s32 %s20, %s27
    %s132 = sor.u32 %s130, %s131
    %p133 = scmp.eq.s32.totalorder %s132, 0
    %s135 = sadd.s32 %s134, 1
    %s136 = scalar_select %p133, %s134, %s135
    %p139 = pneg %p133
    %p140 = scmp.eq.s32.totalorder %s12, 1
    %p141 = por %p139, %p140
    %p142 = scmp.ne.s32.totalorder %s134, %s137
    %p143 = scmp.eq.s32.totalorder %s12, 0
    %p144 = por %p142, %p143
    %p145 = scmp.ne.s32.totalorder %s134, %s137
    %p146 = scmp.eq.s32.totalorder %s17, 1
    %p147 = por %p145, %p146
    %p148 = scmp.ne.s32.totalorder %s137, %s138
    %p149 = scmp.eq.s32.totalorder %s17, 0
    %p150 = por %p148, %p149
    %p151 = scmp.ne.s32.totalorder %s137, %s138
    %p152 = scmp.eq.s32.totalorder %s18, 1
    %p153 = por %p151, %p152
    %p155 = scmp.ne.s32.totalorder %s138, %s154
    %p156 = scmp.eq.s32.totalorder %s18, 0
    %p157 = por %p155, %p156
    %s158 = ssub.s32 %s19, %s31
    %s159 = ssub.s32 %s20, %s27
    %s160 = sor.u32 %s158, %s159
    %p161 = scmp.eq.s32.totalorder %s160, 0
    %s163 = sadd.s32 %s162, 1
    %s164 = scalar_select %p161, %s162, %s163
    %p167 = pneg %p161
    %p168 = scmp.eq.s32.totalorder %s12, 1
    %p169 = por %p167, %p168
    %p170 = scmp.ne.s32.totalorder %s162, %s165
    %p171 = scmp.eq.s32.totalorder %s12, 0
    %p172 = por %p170, %p171
    %p173 = scmp.ne.s32.totalorder %s162, %s165
    %p174 = scmp.eq.s32.totalorder %s17, 1
    %p175 = por %p173, %p174
    %p176 = scmp.ne.s32.totalorder %s165, %s166
    %p177 = scmp.eq.s32.totalorder %s17, 0
    %p178 = por %p176, %p177
    %p179 = scmp.ne.s32.totalorder %s165, %s166
    %p180 = scmp.eq.s32.totalorder %s18, 1
    %p181 = por %p179, %p180
    %p183 = scmp.ne.s32.totalorder %s166, %s182
    %p184 = scmp.eq.s32.totalorder %s18, 0
    %p185 = por %p183, %p184
    %p186 = scmp.le.s32.totalorder 1, %s12
    %p187 = scmp.lt.s32.totalorder %s12, 3
    %p188 = pnand %p186, %p187
    %p189 = pneg %p188
    // Predicated region
    $region9: #{conv_block_3d_forward.2} parent=5 // pred_check
      _
    $region10: #{conv_block_3d_forward.2} parent=5 // pred_check_branch
      %191 = sbr.rel (%p188) target = $region12
    $region11: #{conv_block_3d_forward.2} parent=5 // pred_region
      %s192 = ssub.s32 %s12, 1
      // Predicated region
      $region13: #{conv_block_3d_forward.2} parent=11 // pred_check
        %p193 = pneg %p73
      $region14: #{conv_block_3d_forward.2} parent=11 // pred_check_branch
        %195 = sbr.rel (%p193) target = $region16
      $region15: #{conv_block_3d_forward.2} parent=11 // pred_region
        _
      $region16: #{conv_block_3d_forward.2} parent=11 // pred_fallthru
        _
      // Predicated region
      $region17: #{conv_block_3d_forward.2} parent=11 // pred_check
        %p196 = pneg %p94
      $region18: #{conv_block_3d_forward.2} parent=11 // pred_check_branch
        %198 = sbr.rel (%p196) target = $region20
      $region19: #{conv_block_3d_forward.2} parent=11 // pred_region
        _
      $region20: #{conv_block_3d_forward.2} parent=11 // pred_fallthru
        _
    $region12: #{conv_block_3d_forward.2} parent=5 // pred_fallthru
      _
    %p199 = scmp.lt.s32.totalorder %s12, 2
    // Predicated region
    $region21: #{conv_block_3d_forward.2} parent=5 // pred_check
      %p200 = pneg %p199
    $region22: #{conv_block_3d_forward.2} parent=5 // pred_check_branch
      %202 = sbr.rel (%p200) target = $region24
    $region23: #{conv_block_3d_forward.2} parent=5 // pred_region
      // Predicated region
      $region25: #{conv_block_3d_forward.2} parent=23 // pred_check
        %p203 = pneg %p46
      $region26: #{conv_block_3d_forward.2} parent=23 // pred_check_branch
        %205 = sbr.rel (%p203) target = $region28
      $region27: #{conv_block_3d_forward.2} parent=23 // pred_region
        %s206 = smul.u32 4, %s20
        %p207 = scmp.lt.s32.totalorder %s19, 1
        %s208 = scalar_select %p207, %s19, 1
        %p209 = scmp.lt.s32.totalorder %s206, 3
        %s210 = scalar_select %p209, %s206, 3
        %s211 = smul.addr %s208, 64
        %s212 = sadd.s32 %s210, %s211
        %s213 = smul.addr %s212, 4
        %s214 = scalar_lea.vmem %s0, %s213
        %s215 = smul.u32 4, %s20
      $region28: #{conv_block_3d_forward.2} parent=23 // pred_fallthru
        _
    $region24: #{conv_block_3d_forward.2} parent=5 // pred_fallthru
      _
    %p216 = scmp.le.s32.totalorder 1, %s12
    %p217 = scmp.lt.s32.totalorder %s12, 3
    %p218 = pnand %p216, %p217
    %p219 = pneg %p218
    // Predicated region
    $region29: #{conv_block_3d_forward.2} parent=5 // pred_check
      _
    $region30: #{conv_block_3d_forward.2} parent=5 // pred_check_branch
      %221 = sbr.rel (%p218) target = $region32
    $region31: #{conv_block_3d_forward.2} parent=5 // pred_region
      %s222 = ssub.s32 %s12, 1
      %s223 = smul.u32 4, %s22
      %p224 = scmp.lt.s32.totalorder %s21, 1
      %s225 = scalar_select %p224, %s21, 1
      %p226 = scmp.lt.s32.totalorder %s223, 3
      %s227 = scalar_select %p226, %s223, 3
      %s228 = smul.addr %s225, 64
      %s229 = sadd.s32 %s227, %s228
      %s230 = smul.addr %s229, 4
      %s231 = scalar_lea.vmem %s0, %s230
      %p232 = pneg %p52
      %p233 = pneg %p49
      %p234 = pneg %p73
      %p235 = pneg %p70
      %p236 = pneg %p94
      %p237 = pneg %p91
      %p238 = pneg %p122
      %p239 = pneg %p119
      %s240 = smul.u32 4, %s22
      %p241 = scmp.lt.s32.totalorder %s21, 1
      %s242 = scalar_select %p241, %s21, 1
      %p243 = scmp.lt.s32.totalorder %s240, 3
      %s244 = scalar_select %p243, %s240, 3
      %s245 = smul.addr %s242, 4
      %s246 = sadd.s32 %s244, %s245
      %s247 = smul.addr %s246, 8
      %s248 = scalar_lea.vmem %s3, %s247
      %p249 = pneg %p150
      %p250 = pneg %p147
      %p251 = scmp.lt.s32.totalorder %s21, 1
      %s252 = scalar_select %p251, %s21, 1
      %p253 = scmp.lt.s32.totalorder %s22, 0
      %s254 = scalar_select %p253, %s22, 0
      %s255 = sadd.s32 %s254, %s252
      %s256 = smul.addr %s255, 8
      %s257 = scalar_lea.vmem %s4, %s256
      %p258 = pneg %p178
      %p259 = pneg %p175
      %p260 = scmp.lt.s32.totalorder %s21, 1
      %s261 = scalar_select %p260, %s21, 1
      %p262 = scmp.lt.s32.totalorder %s22, 0
      %s263 = scalar_select %p262, %s22, 0
      %s264 = sadd.s32 %s263, %s261
      %s265 = smul.addr %s264, 8
      %s266 = scalar_lea.vmem %s5, %s265
      %s267 = smul.u32 4, %s22
      %p268 = scmp.lt.s32.totalorder %s21, 1
      %s269 = scalar_select %p268, %s21, 1
      %p270 = scmp.lt.s32.totalorder %s267, 3
      %s271 = scalar_select %p270, %s267, 3
      %s272 = smul.addr %s269, 64
      %s273 = sadd.s32 %s271, %s272
      %s274 = smul.addr %s273, 4
      %s275 = scalar_lea.vmem %s0, %s274
      %s276 = smul.u32 4, %s22
      %s277 = smul.u32 4, %s22
      %p278 = scmp.lt.s32.totalorder %s21, 1
      %s279 = scalar_select %p278, %s21, 1
      %p280 = scmp.lt.s32.totalorder %s277, 3
      %s281 = scalar_select %p280, %s277, 3
      %s282 = smul.addr %s279, 4
      %s283 = sadd.s32 %s281, %s282
      %s284 = smul.addr %s283, 8
      %s285 = scalar_lea.vmem %s3, %s284
      %s286 = smul.u32 4, %s22
      %p287 = scmp.lt.s32.totalorder %s21, 1
      %s288 = scalar_select %p287, %s21, 1
      %p289 = scmp.lt.s32.totalorder %s22, 0
      %s290 = scalar_select %p289, %s22, 0
      %s291 = sadd.s32 %s290, %s288
      %s292 = smul.addr %s291, 8
      %s293 = scalar_lea.vmem %s4, %s292
      %p294 = scmp.lt.s32.totalorder %s21, 1
      %s295 = scalar_select %p294, %s21, 1
      %p296 = scmp.lt.s32.totalorder %s22, 0
      %s297 = scalar_select %p296, %s22, 0
      %s298 = sadd.s32 %s297, %s295
      %s299 = smul.addr %s298, 8
      %s300 = scalar_lea.vmem %s5, %s299
      %v302 = vld [vmem:[%s1] sm:$0xf]
      %v303 = vld [vmem:[%s275] sm:$0xff]
      %v304 = vld [vmem:[%s275 + $0x8] sm:$0xff]
      %v305 = vld [vmem:[%s275 + $0x10] sm:$0xff]
      %v306 = vld [vmem:[%s275 + $0x18] sm:$0xff]
      %v307 = vld [vmem:[%s275 + $0x20] sm:$0xff]
      %v308 = vld [vmem:[%s275 + $0x28] sm:$0xff]
      %v309 = vld [vmem:[%s275 + $0x30] sm:$0xff]
      %v310 = vld [vmem:[%s275 + $0x38] sm:$0xff]
      %v311 = vld [vmem:[%s275 + $0x40] sm:$0xff]
      %v312 = vld [vmem:[%s275 + $0x48] sm:$0xff]
      %v313 = vld [vmem:[%s275 + $0x50] sm:$0xff]
      %v314 = vld [vmem:[%s275 + $0x58] sm:$0xff]
      %v315 = vld [vmem:[%s275 + $0x60] sm:$0xff]
      %v316 = vld [vmem:[%s275 + $0x68] sm:$0xff]
      %v317 = vld [vmem:[%s275 + $0x70] sm:$0xff]
      %v318 = vld [vmem:[%s275 + $0x78] sm:$0xff]
      %v319 = vld [vmem:[%s275 + $0x80] sm:$0xff]
      %v320 = vld [vmem:[%s275 + $0x88] sm:$0xff]
      %v321 = vld [vmem:[%s275 + $0x90] sm:$0xff]
      %v322 = vld [vmem:[%s275 + $0x98] sm:$0xff]
      %v323 = vld [vmem:[%s275 + $0xa0] sm:$0xff]
      %v324 = vld [vmem:[%s275 + $0xa8] sm:$0xff]
      %v325 = vld [vmem:[%s275 + $0xb0] sm:$0xff]
      %v326 = vld [vmem:[%s275 + $0xb8] sm:$0xff]
      %v327 = vld [vmem:[%s275 + $0xc0] sm:$0xff]
      %v328 = vld [vmem:[%s275 + $0xc8] sm:$0xff]
      %v329 = vld [vmem:[%s275 + $0xd0] sm:$0xff]
      %v330 = vld [vmem:[%s275 + $0xd8] sm:$0xff]
      %v331 = vld [vmem:[%s275 + $0xe0] sm:$0xff]
      %v332 = vld [vmem:[%s275 + $0xe8] sm:$0xff]
      %v333 = vld [vmem:[%s275 + $0xf0] sm:$0xff]
      %v334 = vld [vmem:[%s275 + $0xf8] sm:$0xff]
      %v335 = vld [vmem:[%s2] sm:$0xff]
      %337 = vset.pattern.permute.xlu0 0
      %338 = vperm.xlu0 %337, %v335
      %v339 = vpop.permute.xlu0 %338
      %v373 = vunpack.c.l.b16 %v303
      %v374 = vunpack.c.h.b16 %v303
      %v375 = vunpack.c.l.b16 %v304
      %v376 = vunpack.c.h.b16 %v304
      %v377 = vunpack.c.l.b16 %v305
      %v378 = vunpack.c.h.b16 %v305
      %v379 = vunpack.c.l.b16 %v306
      %v380 = vunpack.c.h.b16 %v306
      %v381 = vunpack.c.l.b16 %v307
      %v382 = vunpack.c.h.b16 %v307
      %v383 = vunpack.c.l.b16 %v308
      %v384 = vunpack.c.h.b16 %v308
      %v385 = vunpack.c.l.b16 %v309
      %v386 = vunpack.c.h.b16 %v309
      %v387 = vunpack.c.l.b16 %v310
      %v388 = vunpack.c.h.b16 %v310
      %v389 = vunpack.c.l.b16 %v311
      %v390 = vunpack.c.h.b16 %v311
      %v391 = vunpack.c.l.b16 %v312
      %v392 = vunpack.c.h.b16 %v312
      %v393 = vunpack.c.l.b16 %v313
      %v394 = vunpack.c.h.b16 %v313
      %v395 = vunpack.c.l.b16 %v314
      %v396 = vunpack.c.h.b16 %v314
      %v397 = vunpack.c.l.b16 %v315
      %v398 = vunpack.c.h.b16 %v315
      %v399 = vunpack.c.l.b16 %v316
      %v400 = vunpack.c.h.b16 %v316
      %v401 = vunpack.c.l.b16 %v317
      %v402 = vunpack.c.h.b16 %v317
      %v403 = vunpack.c.l.b16 %v318
      %v404 = vunpack.c.h.b16 %v318
      %v405 = vunpack.c.l.b16 %v319
      %v406 = vunpack.c.h.b16 %v319
      %v407 = vunpack.c.l.b16 %v320
      %v408 = vunpack.c.h.b16 %v320
      %v409 = vunpack.c.l.b16 %v321
      %v410 = vunpack.c.h.b16 %v321
      %v411 = vunpack.c.l.b16 %v322
      %v412 = vunpack.c.h.b16 %v322
      %v413 = vunpack.c.l.b16 %v323
      %v414 = vunpack.c.h.b16 %v323
      %v415 = vunpack.c.l.b16 %v324
      %v416 = vunpack.c.h.b16 %v324
      %v417 = vunpack.c.l.b16 %v325
      %v418 = vunpack.c.h.b16 %v325
      %v419 = vunpack.c.l.b16 %v326
      %v420 = vunpack.c.h.b16 %v326
      %v421 = vunpack.c.l.b16 %v327
      %v422 = vunpack.c.h.b16 %v327
      %v423 = vunpack.c.l.b16 %v328
      %v424 = vunpack.c.h.b16 %v328
      %v425 = vunpack.c.l.b16 %v329
      %v426 = vunpack.c.h.b16 %v329
      %v427 = vunpack.c.l.b16 %v330
      %v428 = vunpack.c.h.b16 %v330
      %v429 = vunpack.c.l.b16 %v331
      %v430 = vunpack.c.h.b16 %v331
      %v431 = vunpack.c.l.b16 %v332
      %v432 = vunpack.c.h.b16 %v332
      %v433 = vunpack.c.l.b16 %v333
      %v434 = vunpack.c.h.b16 %v333
      %v435 = vunpack.c.l.b16 %v334
      %v436 = vunpack.c.h.b16 %v334
      %v437 = vpack.c.b16 %v377, %v373
      %v438 = vpack.c.b16 %v378, %v374
      %v439 = vpack.c.b16 %v379, %v375
      %v440 = vpack.c.b16 %v380, %v376
      %v441 = vpack.c.b16 %v385, %v381
      %v442 = vpack.c.b16 %v386, %v382
      %v443 = vpack.c.b16 %v387, %v383
      %v444 = vpack.c.b16 %v388, %v384
      %v445 = vpack.c.b16 %v393, %v389
      %v446 = vpack.c.b16 %v394, %v390
      %v447 = vpack.c.b16 %v395, %v391
      %v448 = vpack.c.b16 %v396, %v392
      %v449 = vpack.c.b16 %v401, %v397
      %v450 = vpack.c.b16 %v402, %v398
      %v451 = vpack.c.b16 %v403, %v399
      %v452 = vpack.c.b16 %v404, %v400
      %v453 = vpack.c.b16 %v409, %v405
      %v454 = vpack.c.b16 %v410, %v406
      %v455 = vpack.c.b16 %v411, %v407
      %v456 = vpack.c.b16 %v412, %v408
      %v457 = vpack.c.b16 %v417, %v413
      %v458 = vpack.c.b16 %v418, %v414
      %v459 = vpack.c.b16 %v419, %v415
      %v460 = vpack.c.b16 %v420, %v416
      %v461 = vpack.c.b16 %v425, %v421
      %v462 = vpack.c.b16 %v426, %v422
      %v463 = vpack.c.b16 %v427, %v423
      %v464 = vpack.c.b16 %v428, %v424
      %v465 = vpack.c.b16 %v433, %v429
      %v466 = vpack.c.b16 %v434, %v430
      %v467 = vpack.c.b16 %v435, %v431
      %v468 = vpack.c.b16 %v436, %v432
      %501 = vmatprep.subr.bf16.mxu0 %v438
      %502 = vmatpush1.bf16.msra.mxu0 %v437
      %503 = vmatprep.subr.bf16.mxu0 %v442
      %504 = vmatpush1.bf16.msra.mxu0 %v441
      %505 = vmatprep.subr.bf16.mxu0 %v446
      %506 = vmatpush1.bf16.msra.mxu0 %v445
      %507 = vmatprep.subr.bf16.mxu0 %v450
      %508 = vmatpush1.bf16.msra.mxu0 %v449
      %509 = vmatprep.subr.bf16.mxu0 %v454
      %510 = vmatpush1.bf16.msra.mxu0 %v453
      %511 = vmatprep.subr.bf16.mxu0 %v458
      %512 = vmatpush1.bf16.msra.mxu0 %v457
      %513 = vmatprep.subr.bf16.mxu0 %v462
      %514 = vmatpush1.bf16.msra.mxu0 %v461
      %515 = vmatprep.subr.bf16.mxu0 %v466
      %516 = vmatpush1.bf16.msra.mxu0 %v465
      %517 = vmatprep.subr.bf16.mxu0 0
      %518 = vmatpush1.bf16.msra.mxu0 0
      %519 = vmatprep.subr.bf16.mxu0 0
      %520 = vmatpush1.bf16.msra.mxu0 0
      %521 = vmatprep.subr.bf16.mxu0 0
      %522 = vmatpush1.bf16.msra.mxu0 0
      %523 = vmatprep.subr.bf16.mxu0 0
      %524 = vmatpush1.bf16.msra.mxu0 0
      %525 = vmatprep.subr.bf16.mxu0 0
      %526 = vmatpush1.bf16.msra.mxu0 0
      %527 = vmatprep.subr.bf16.mxu0 0
      %528 = vmatpush1.bf16.msra.mxu0 0
      %529 = vmatprep.subr.bf16.mxu0 0
      %530 = vmatpush1.bf16.msra.mxu0 0
      %531 = vmatprep.subr.bf16.mxu0 0
      %532 = vmatpush1.bf16.msra.mxu0 0
      %533 = vmatprep.mubr.bf16.mxu0 0
      %534 = vmatmul.mubr.bf16.gmra.mrb[0].mxu0 %v302
      %v535 = vpop.f32.mrb[0].mxu0
      %v536 = vadd.f32 %v339, %v535
      %v537 = vpop.f32.mrb[0].mxu0
      %v538 = vadd.f32 %v339, %v537
      %v539 = vpop.f32.mrb[0].mxu0
      %v540 = vpop.f32.mrb[0].mxu0
      %541 = vdwg.mxu0
      %542 = vmatprep.subr.bf16.mxu0 %v440
      %543 = vmatpush1.bf16.msra.mxu0 %v439
      %544 = vmatprep.subr.bf16.mxu0 %v444
      %545 = vmatpush1.bf16.msra.mxu0 %v443
      %546 = vmatprep.subr.bf16.mxu0 %v448
      %547 = vmatpush1.bf16.msra.mxu0 %v447
      %548 = vmatprep.subr.bf16.mxu0 %v452
      %549 = vmatpush1.bf16.msra.mxu0 %v451
      %550 = vmatprep.subr.bf16.mxu0 %v456
      %551 = vmatpush1.bf16.msra.mxu0 %v455
      %552 = vmatprep.subr.bf16.mxu0 %v460
      %553 = vmatpush1.bf16.msra.mxu0 %v459
      %554 = vmatprep.subr.bf16.mxu0 %v464
      %555 = vmatpush1.bf16.msra.mxu0 %v463
      %556 = vmatprep.subr.bf16.mxu0 %v468
      %557 = vmatpush1.bf16.msra.mxu0 %v467
      %558 = vmatprep.subr.bf16.mxu0 0
      %559 = vmatpush1.bf16.msra.mxu0 0
      %560 = vmatprep.subr.bf16.mxu0 0
      %561 = vmatpush1.bf16.msra.mxu0 0
      %562 = vmatprep.subr.bf16.mxu0 0
      %563 = vmatpush1.bf16.msra.mxu0 0
      %564 = vmatprep.subr.bf16.mxu0 0
      %565 = vmatpush1.bf16.msra.mxu0 0
      %566 = vmatprep.subr.bf16.mxu0 0
      %567 = vmatpush1.bf16.msra.mxu0 0
      %568 = vmatprep.subr.bf16.mxu0 0
      %569 = vmatpush1.bf16.msra.mxu0 0
      %570 = vmatprep.subr.bf16.mxu0 0
      %571 = vmatpush1.bf16.msra.mxu0 0
      %572 = vmatprep.subr.bf16.mxu0 0
      %573 = vmatpush1.bf16.msra.mxu0 0
      %574 = vmatprep.mubr.bf16.mxu0 0
      %575 = vmatmul.mubr.bf16.gmra.mrb[0].mxu0 %v302
      %v576 = vpop.f32.mrb[0].mxu0
      %v577 = vadd.f32 %v339, %v576
      %v578 = vpop.f32.mrb[0].mxu0
      %v579 = vadd.f32 %v339, %v578
      %v580 = vpop.f32.mrb[0].mxu0
      %v581 = vpop.f32.mrb[0].mxu0
      %582 = vdwg.mxu0
      %583 = vst [vmem:[%s285] sm:$0xff] %v536
      %584 = vst [vmem:[%s285 + $0x8] sm:$0xff] %v538
      %585 = vst [vmem:[%s285 + $0x10] sm:$0xff] %v577
      %586 = vst [vmem:[%s285 + $0x18] sm:$0xff] %v579
      %v587 = vadd.f32 %v536, %v538
      %v588 = vadd.f32 %v587, %v577
      %v589 = vadd.f32 %v588, %v579
      %590 = vadd.xlane.f32.xlu0 %v589
      %v591 = vpop.xlane.xlu0 %590
      %vm592 = vcmask 7168
      %593 = vst.msk [vmem:[%s293] sm:$0xff] %vm592, %v591
      %v594 = vmul.f32 %v536, %v536
      %v595 = vmul.f32 %v538, %v538
      %v596 = vmul.f32 %v577, %v577
      %v597 = vmul.f32 %v579, %v579
      %v598 = vadd.f32 %v594, %v595
      %v599 = vadd.f32 %v598, %v596
      %v600 = vadd.f32 %v599, %v597
      %601 = vadd.xlane.f32.xlu0 %v600
      %v602 = vpop.xlane.xlu0 %601
      %603 = vst.msk [vmem:[%s300] sm:$0xff] %vm592, %v602
      %s604 = smul.u32 4, %s22
      %p605 = scmp.lt.s32.totalorder %s21, 1
      %s606 = scalar_select %p605, %s21, 1
      %p607 = scmp.lt.s32.totalorder %s604, 3
      %s608 = scalar_select %p607, %s604, 3
      %s609 = smul.addr %s606, 4
      %s610 = sadd.s32 %s608, %s609
      %s611 = smul.addr %s610, 8
      %s612 = scalar_lea.vmem %s3, %s611
      %p613 = scmp.lt.s32.totalorder %s21, 1
      %s614 = scalar_select %p613, %s21, 1
      %p615 = scmp.lt.s32.totalorder %s22, 0
      %s616 = scalar_select %p615, %s22, 0
      %s617 = sadd.s32 %s616, %s614
      %s618 = smul.addr %s617, 8
      %s619 = scalar_lea.vmem %s4, %s618
      %p620 = scmp.lt.s32.totalorder %s21, 1
      %s621 = scalar_select %p620, %s21, 1
      %p622 = scmp.lt.s32.totalorder %s22, 0
      %s623 = scalar_select %p622, %s22, 0
      %s624 = sadd.s32 %s623, %s621
      %s625 = smul.addr %s624, 8
      %s626 = scalar_lea.vmem %s5, %s625
      // Predicated region
      $region33: #{conv_block_3d_forward.2} parent=31 // pred_check
        %p627 = pneg %p119
      $region34: #{conv_block_3d_forward.2} parent=31 // pred_check_branch
        %629 = sbr.rel (%p627) target = $region36
      $region35: #{conv_block_3d_forward.2} parent=31 // pred_region
        %s630 = smul.u32 4, %s22
      $region36: #{conv_block_3d_forward.2} parent=31 // pred_fallthru
        _
      // Predicated region
      $region37: #{conv_block_3d_forward.2} parent=31 // pred_check
        %p631 = pneg %p147
      $region38: #{conv_block_3d_forward.2} parent=31 // pred_check_branch
        %633 = sbr.rel (%p631) target = $region40
      $region39: #{conv_block_3d_forward.2} parent=31 // pred_region
        _
      $region40: #{conv_block_3d_forward.2} parent=31 // pred_fallthru
        _
      // Predicated region
      $region41: #{conv_block_3d_forward.2} parent=31 // pred_check
        %p634 = pneg %p175
      $region42: #{conv_block_3d_forward.2} parent=31 // pred_check_branch
        %636 = sbr.rel (%p634) target = $region44
      $region43: #{conv_block_3d_forward.2} parent=31 // pred_region
        _
      $region44: #{conv_block_3d_forward.2} parent=31 // pred_fallthru
        _
    $region32: #{conv_block_3d_forward.2} parent=5 // pred_fallthru
      _
    %p637 = scmp.le.s32.totalorder 2, %s12
    // Predicated region
    $region45: #{conv_block_3d_forward.2} parent=5 // pred_check
      %p638 = pneg %p637
    $region46: #{conv_block_3d_forward.2} parent=5 // pred_check_branch
      %640 = sbr.rel (%p638) target = $region48
    $region47: #{conv_block_3d_forward.2} parent=5 // pred_region
      %s641 = ssub.s32 %s12, 2
      // Predicated region
      $region49: #{conv_block_3d_forward.2} parent=47 // pred_check
        %p642 = pneg %p125
      $region50: #{conv_block_3d_forward.2} parent=47 // pred_check_branch
        %644 = sbr.rel (%p642) target = $region52
      $region51: #{conv_block_3d_forward.2} parent=47 // pred_region
        %s645 = smul.u32 4, %s24
        %p646 = scmp.lt.s32.totalorder %s23, 1
        %s647 = scalar_select %p646, %s23, 1
        %p648 = scmp.lt.s32.totalorder %s645, 3
        %s649 = scalar_select %p648, %s645, 3
        %s650 = smul.addr %s647, 4
        %s651 = sadd.s32 %s649, %s650
        %s652 = smul.addr %s651, 8
        %s653 = scalar_lea.vmem %s3, %s652
      $region52: #{conv_block_3d_forward.2} parent=47 // pred_fallthru
        _
      // Predicated region
      $region53: #{conv_block_3d_forward.2} parent=47 // pred_check
        %p654 = pneg %p153
      $region54: #{conv_block_3d_forward.2} parent=47 // pred_check_branch
        %656 = sbr.rel (%p654) target = $region56
      $region55: #{conv_block_3d_forward.2} parent=47 // pred_region
        %p657 = scmp.lt.s32.totalorder %s23, 1
        %s658 = scalar_select %p657, %s23, 1
        %p659 = scmp.lt.s32.totalorder %s24, 0
        %s660 = scalar_select %p659, %s24, 0
        %s661 = sadd.s32 %s660, %s658
        %s662 = smul.addr %s661, 8
        %s663 = scalar_lea.vmem %s4, %s662
      $region56: #{conv_block_3d_forward.2} parent=47 // pred_fallthru
        _
      // Predicated region
      $region57: #{conv_block_3d_forward.2} parent=47 // pred_check
        %p664 = pneg %p181
      $region58: #{conv_block_3d_forward.2} parent=47 // pred_check_branch
        %666 = sbr.rel (%p664) target = $region60
      $region59: #{conv_block_3d_forward.2} parent=47 // pred_region
        %p667 = scmp.lt.s32.totalorder %s23, 1
        %s668 = scalar_select %p667, %s23, 1
        %p669 = scmp.lt.s32.totalorder %s24, 0
        %s670 = scalar_select %p669, %s24, 0
        %s671 = sadd.s32 %s670, %s668
        %s672 = smul.addr %s671, 8
        %s673 = scalar_lea.vmem %s5, %s672
      $region60: #{conv_block_3d_forward.2} parent=47 // pred_fallthru
        _
    $region48: #{conv_block_3d_forward.2} parent=5 // pred_fallthru
      _
  $region6: #{conv_block_3d_forward.2} parent=0 // loop_footer
    %s16 = sadd.s32 1, %s12
  $region7: #{conv_block_3d_forward.2} parent=0 // loop_footer_branch
    %11 = sbr.rel target = $region3
  $region8: #{conv_block_3d_forward.2} parent=0 // loop_exit
    _

</llo_original>
